<compile_context>
chip_gen: v7x
topology: tpu7x:2x2x1
jax: 0.10.0
libtpu: 0.0.40
codegen_flags: <defaults>
</compile_context>

<pallas_src>
import numpy as np
import jax
import jax.numpy as jnp
from jax import lax
from jax.experimental import pallas as pl
from jax.experimental.pallas import tpu as pltpu

EPS = 1e-5


def _cond_norm_kernel(x_ref, gamma_ref, beta_ref, o_ref):
    # x_ref / o_ref: (N, Ct, HW) current channel tile.
    # gamma_ref / beta_ref: (N, C, 1), full array, resident across the grid.
    i = pl.program_id(0)
    n, ct, hw = x_ref.shape
    count = jnp.float32(n * hw)

    x = x_ref[...].astype(jnp.float32)

    # Stats: reduce batch axis first (cheap VALU vreg adds), lanes second
    # (single XLU cross-lane reduce per channel group).
    s = jnp.sum(x, axis=0, keepdims=True)               # (1, Ct, HW)
    s = jnp.sum(s, axis=2, keepdims=True)                # (1, Ct, 1)
    mean = s / count

    # Numerically stable variance: mean((x - mean)^2) instead of E[x^2]-E[x]^2.
    centered = x - mean                                  # (N, Ct, HW)
    ss = jnp.sum(centered * centered, axis=0, keepdims=True)
    ss = jnp.sum(ss, axis=2, keepdims=True)              # (1, Ct, 1)
    var = ss / count
    inv = lax.rsqrt(var + EPS)                           # (1, Ct, 1)

    # Slice the resident conditional-affine parameters for this channel tile.
    c0 = pl.multiple_of(i * ct, ct)
    gamma = gamma_ref[:, pl.ds(c0, ct), :].astype(jnp.float32)   # (N, Ct, 1)
    beta = beta_ref[:, pl.ds(c0, ct), :].astype(jnp.float32)     # (N, Ct, 1)

    o_ref[...] = (centered * (gamma * inv) + beta).astype(o_ref.dtype)


def _vmem_capacity_bytes():
    try:
        return int(pltpu.get_tpu_info().vmem_capacity_bytes)
    except Exception:
        return 128 << 20  # conservative v5e/v6e default


def _footprint_bytes(N, C, Ct, HW, in_itemsize, out_itemsize):
    """Honest VMEM accounting for one grid step."""
    io = 2 * N * Ct * HW * (in_itemsize + out_itemsize)      # double-buffered in+out
    temps = 3 * N * Ct * HW * 4                              # f32 x, centered, partials
    pad_c = -(-C // 8) * 8
    affine = 2 * N * pad_c * 128 * 4                         # resident gamma/beta (lane-padded)
    return io + temps + affine


def _pick_channel_tile(N, C, HW, in_itemsize, out_itemsize, vmem_budget_bytes,
                       sub_mult):
    """Pick channel tile Ct: largest multiple of sub_mult dividing C that fits
    the budget, with >= ~4 grid steps and a preference for an even step count
    (v7x megacore).  Falls back to a full-C block when C % sub_mult != 0."""
    if C % sub_mult != 0:
        # Full-dim block always satisfies the layout constraint.
        return C, _footprint_bytes(N, C, C, HW, in_itemsize, out_itemsize)

    candidates = [ct for ct in range(sub_mult, C + 1, sub_mult) if C % ct == 0]
    fitting = [ct for ct in candidates
               if _footprint_bytes(N, C, ct, HW, in_itemsize, out_itemsize)
               <= vmem_budget_bytes]
    if not fitting:
        # TODO(synk): streaming two-pass fallback (second "arbitrary" grid axis
        # over HW accumulating per-channel sums in scratch) for huge N*HW.
        ct = candidates[0]
        return ct, _footprint_bytes(N, C, ct, HW, in_itemsize, out_itemsize)

    min_steps = min(4, C // sub_mult)

    def score(ct):
        steps = C // ct
        return (steps >= min_steps, steps % 2 == 0, ct)

    best = max(fitting, key=score)
    return best, _footprint_bytes(N, C, best, HW, in_itemsize, out_itemsize)


def conditional_norm(x_nchw, class_id, embed_weight):
    """x_nchw: (N, C, H, W) float32 or bfloat16; class_id: (N,) int32;
    embed_weight: (n_class, 2*C)."""
    N, C, H, W = x_nchw.shape
    HW = H * W
    in_itemsize = x_nchw.dtype.itemsize
    out_itemsize = in_itemsize

    # Sublane multiple for the channel tile depends on the packed dtype.
    sub_mult = {4: 8, 2: 16, 1: 32}.get(in_itemsize, 8)

    # --- tiny wrapper glue: embedding lookup (gather) -----------------------
    embed = embed_weight[class_id].astype(jnp.float32)   # (N, 2*C)
    gamma = embed[:, :C].reshape(N, C, 1)
    beta = embed[:, C:].reshape(N, C, 1)

    x_ncs = x_nchw.reshape(N, C, HW)                     # contiguous reshape (free)

    capacity = _vmem_capacity_bytes()
    budget = min(capacity // 3, 40 << 20)                # ~20 MiB v7x, ~40 MiB v5e/v6e
    Ct, footprint = _pick_channel_tile(N, C, HW, in_itemsize, out_itemsize,
                                       budget, sub_mult)
    grid = (C // Ct,)

    vmem_limit = max(16 << 20, int(1.5 * footprint) + (2 << 20))
    vmem_limit = min(vmem_limit, int(0.9 * capacity))

    cost = pl.CostEstimate(
        flops=int(8 * N * C * HW),
        transcendentals=int(C),
        bytes_accessed=int(N * C * HW * (in_itemsize + out_itemsize)
                           + 2 * N * 2 * C * 4),
    )

    out_ncs = pl.pallas_call(
        _cond_norm_kernel,
        out_shape=jax.ShapeDtypeStruct((N, C, HW), x_nchw.dtype),
        grid=grid,
        in_specs=[
            pl.BlockSpec((N, Ct, HW), lambda i: (0, i, 0)),
            # gamma/beta: full array, constant index_map -> resident in VMEM,
            # DMA'd once for the whole grid.
            pl.BlockSpec((N, C, 1), lambda i: (0, 0, 0)),
            pl.BlockSpec((N, C, 1), lambda i: (0, 0, 0)),
        ],
        out_specs=pl.BlockSpec((N, Ct, HW), lambda i: (0, i, 0)),
        compiler_params=pltpu.CompilerParams(
            dimension_semantics=("parallel",),
            vmem_limit_bytes=vmem_limit),
        cost_estimate=cost,
    )(x_ncs, gamma, beta)

    return out_ncs.reshape(N, C, H, W)


def reference(x_nchw, class_id, embed_weight):
    """Pure-JAX reference mirroring the PyTorch forward (training-mode BN)."""
    x = x_nchw.astype(jnp.float32)
    N, C, H, W = x.shape
    mean = jnp.mean(x, axis=(0, 2, 3), keepdims=True)
    var = jnp.var(x, axis=(0, 2, 3), keepdims=True)      # biased
    out = (x - mean) / jnp.sqrt(var + EPS)
    embed = embed_weight[class_id].astype(jnp.float32)
    gamma = embed[:, :C][:, :, None, None]
    beta = embed[:, C:][:, :, None, None]
    return gamma * out + beta


def _make_embed_weight(key, n_class, C):
    # PyTorch __init__ sets the gamma half to 1 and the beta half to 0; add a
    # small deterministic perturbation so the conditional path is exercised.
    w = jnp.concatenate([jnp.ones((n_class, C), jnp.float32),
                         jnp.zeros((n_class, C), jnp.float32)], axis=1)
    return w + 0.1 * jax.random.normal(key, (n_class, 2 * C), dtype=jnp.float32)


if __name__ == "__main__":
    key = jax.random.PRNGKey(0)
    k_x, k_cls, k_emb, k_x2, k_cls2, k_emb2 = jax.random.split(key, 6)
    n_class = 10

    # --- test 1: f32, tiny C (full-C block path) -----------------------------
    N, C, H, W = 2, 4, 16, 16
    x = jax.random.normal(k_x, (N, C, H, W), dtype=jnp.float32)
    class_id = jax.random.randint(k_cls, (N,), 0, n_class, dtype=jnp.int32)
    embed_weight = _make_embed_weight(k_emb, n_class, C)

    out = jax.block_until_ready(conditional_norm(x, class_id, embed_weight))
    ref = reference(x, class_id, embed_weight)
    assert out.shape == (N, C, H, W)
    np.testing.assert_allclose(np.asarray(out), np.asarray(ref),
                               rtol=1e-5, atol=1e-5)

    # --- test 2: bf16 I/O path, channel-tiled grid ----------------------------
    N2, C2, H2, W2 = 2, 32, 16, 16
    x2 = jax.random.normal(k_x2, (N2, C2, H2, W2), dtype=jnp.float32)
    x2_bf16 = x2.astype(jnp.bfloat16)
    class_id2 = jax.random.randint(k_cls2, (N2,), 0, n_class, dtype=jnp.int32)
    embed_weight2 = _make_embed_weight(k_emb2, n_class, C2)

    out2 = jax.block_until_ready(
        conditional_norm(x2_bf16, class_id2, embed_weight2))
    ref2 = reference(x2_bf16, class_id2, embed_weight2)
    assert out2.shape == (N2, C2, H2, W2)
    assert out2.dtype == jnp.bfloat16
    np.testing.assert_allclose(np.asarray(out2, dtype=np.float32),
                               np.asarray(ref2), rtol=2e-2, atol=2e-2)

    print("KERNEL_OK")
</pallas_src>

<mosaic_0001>
module attributes {stable_mosaic.version = 11 : i64} {
  func.func @_cond_norm_kernel(%arg0: i32, %arg1: memref<2x4x256xf32, #tpu.memory_space<vmem>>, %arg2: memref<2x4x1xf32, #tpu.memory_space<vmem>>, %arg3: memref<2x4x1xf32, #tpu.memory_space<vmem>>, %arg4: memref<2x4x256xf32, #tpu.memory_space<vmem>>) attributes {dimension_semantics = [#tpu.dimension_semantics<parallel>], iteration_bounds = array<i64: 1>, scalar_prefetch = 0 : i64, scratch_operands = 0 : i64, tpu.core_type = #tpu.core_type<tc>, window_params = [{transform_indices = @transform_0, window_bounds = array<i64: 2, 4, 256>}, {pipeline_mode = #tpu.pipeline_mode<synchronous>, transform_indices = @transform_1, window_bounds = array<i64: 2, 4, 1>}, {pipeline_mode = #tpu.pipeline_mode<synchronous>, transform_indices = @transform_2, window_bounds = array<i64: 2, 4, 1>}, {transform_indices = @transform_3, window_bounds = array<i64: 2, 4, 256>}]} {
    %c0 = arith.constant 0 : index
    %c0_0 = arith.constant 0 : index
    %c0_1 = arith.constant 0 : index
    %0 = vector.load %arg1[%c0, %c0_0, %c0_1] : memref<2x4x256xf32, #tpu.memory_space<vmem>>, vector<2x4x256xf32>
    %cst = arith.constant dense<0.000000e+00> : vector<4x256xf32>
    %1 = vector.multi_reduction <add>, %0, %cst [0] : vector<2x4x256xf32> to vector<4x256xf32>
    %2 = vector.shape_cast %1 : vector<4x256xf32> to vector<1x4x256xf32>
    %cst_2 = arith.constant dense<0.000000e+00> : vector<1x4xf32>
    %3 = vector.multi_reduction <add>, %2, %cst_2 [2] : vector<1x4x256xf32> to vector<1x4xf32>
    %4 = vector.shape_cast %3 : vector<1x4xf32> to vector<1x4x1xf32>
    %cst_3 = arith.constant 5.120000e+02 : f32
    %5 = vector.broadcast %cst_3 : f32 to vector<1x4x1xf32>
    %6 = arith.divf %4, %5 : vector<1x4x1xf32>
    %7 = vector.broadcast %6 : vector<1x4x1xf32> to vector<2x4x256xf32>
    %8 = arith.subf %0, %7 : vector<2x4x256xf32>
    %9 = arith.mulf %8, %8 : vector<2x4x256xf32>
    %cst_4 = arith.constant dense<0.000000e+00> : vector<4x256xf32>
    %10 = vector.multi_reduction <add>, %9, %cst_4 [0] : vector<2x4x256xf32> to vector<4x256xf32>
    %11 = vector.shape_cast %10 : vector<4x256xf32> to vector<1x4x256xf32>
    %cst_5 = arith.constant dense<0.000000e+00> : vector<1x4xf32>
    %12 = vector.multi_reduction <add>, %11, %cst_5 [2] : vector<1x4x256xf32> to vector<1x4xf32>
    %13 = vector.shape_cast %12 : vector<1x4xf32> to vector<1x4x1xf32>
    %cst_6 = arith.constant 5.120000e+02 : f32
    %14 = vector.broadcast %cst_6 : f32 to vector<1x4x1xf32>
    %15 = arith.divf %13, %14 : vector<1x4x1xf32>
    %cst_7 = arith.constant 9.99999974E-6 : f32
    %16 = vector.broadcast %cst_7 : f32 to vector<1x4x1xf32>
    %17 = arith.addf %15, %16 : vector<1x4x1xf32>
    %18 = math.rsqrt %17 : vector<1x4x1xf32>
    %c4_i32 = arith.constant 4 : i32
    %19 = arith.muli %arg0, %c4_i32 : i32
    %20 = tpu.assume_multiple %19, 4 : i32
    %c0_8 = arith.constant 0 : index
    %21 = arith.index_cast %20 : i32 to index
    %c0_9 = arith.constant 0 : index
    %22 = vector.load %arg2[%c0_8, %21, %c0_9] : memref<2x4x1xf32, #tpu.memory_space<vmem>>, vector<2x4x1xf32>
    %c0_10 = arith.constant 0 : index
    %23 = arith.index_cast %20 : i32 to index
    %c0_11 = arith.constant 0 : index
    %24 = vector.load %arg3[%c0_10, %23, %c0_11] : memref<2x4x1xf32, #tpu.memory_space<vmem>>, vector<2x4x1xf32>
    %25 = vector.broadcast %18 : vector<1x4x1xf32> to vector<2x4x1xf32>
    %26 = arith.mulf %22, %25 : vector<2x4x1xf32>
    %27 = vector.broadcast %26 : vector<2x4x1xf32> to vector<2x4x256xf32>
    %28 = arith.mulf %8, %27 : vector<2x4x256xf32>
    %29 = vector.broadcast %24 : vector<2x4x1xf32> to vector<2x4x256xf32>
    %30 = arith.addf %28, %29 : vector<2x4x256xf32>
    %c0_12 = arith.constant 0 : index
    %c0_13 = arith.constant 0 : index
    %c0_14 = arith.constant 0 : index
    %31 = vector.load %arg4[%c0_12, %c0_13, %c0_14] : memref<2x4x256xf32, #tpu.memory_space<vmem>>, vector<2x4x256xf32>
    tpu.vector_store %arg4[%c0_12, %c0_13, %c0_14], %30 {strides = array<i32>} : memref<2x4x256xf32, #tpu.memory_space<vmem>>, vector<2x4x256xf32>,
    return
  }
  func.func @transform_0(%arg0: i32) -> (i32, i32, i32) {
    %c0_i32 = arith.constant 0 : i32
    %c0_i32_0 = arith.constant 0 : i32
    %c0_i32_1 = arith.constant 0 : i32
    return %c0_i32, %arg0, %c0_i32_0 : i32, i32, i32
  }
  func.func @transform_1(%arg0: i32) -> (i32, i32, i32) {
    %c0_i32 = arith.constant 0 : i32
    %c0_i32_0 = arith.constant 0 : i32
    %c0_i32_1 = arith.constant 0 : i32
    %c0_i32_2 = arith.constant 0 : i32
    return %c0_i32, %c0_i32_0, %c0_i32_1 : i32, i32, i32
  }
  func.func @transform_2(%arg0: i32) -> (i32, i32, i32) {
    %c0_i32 = arith.constant 0 : i32
    %c0_i32_0 = arith.constant 0 : i32
    %c0_i32_1 = arith.constant 0 : i32
    %c0_i32_2 = arith.constant 0 : i32
    return %c0_i32, %c0_i32_0, %c0_i32_1 : i32, i32, i32
  }
  func.func @transform_3(%arg0: i32) -> (i32, i32, i32) {
    %c0_i32 = arith.constant 0 : i32
    %c0_i32_0 = arith.constant 0 : i32
    %c0_i32_1 = arith.constant 0 : i32
    return %c0_i32, %arg0, %c0_i32_0 : i32, i32, i32
  }
}

</mosaic_0001>

<llo_original>
// kernel: tpu_custom_call.1
$region0: #{tpu_custom_call.1}
  #allocation0 [shape = 'u32[]', space=smem, size = 0x4, offset = 0x4, fixed_abs, tag = 'smem constant byte address 0x4 - core index']
  #allocation1 [shape = 'u32[144,128]{1,0:T(1,128)}', space=vmem, size = 0x12000, scoped, tag = 'internal scratch']
  %s0 = inlined_call_operand.vmem [shape: f32[2,4,256], index: 0, kind: input, shape index: {}]
  %s1 = inlined_call_operand.vmem [shape: f32[2,4,1], index: 1, kind: input, shape index: {}]
  %s2 = inlined_call_operand.vmem [shape: f32[2,4,1], index: 2, kind: input, shape index: {}]
  %s3 = inlined_call_operand.hbm [shape: f32[2,4,256], index: 3, kind: output, shape index: {}]
  %s4 = sld [smem:[#allocation0]]
  $region22: #{tpu_custom_call.1} parent=0
    _
  %s6 = ssub.s32 1, %s4
  %s7 = scalar_select 0, %s6, %s4
  $region1: #{tpu_custom_call.1} parent=0
    #allocation2 [shape = 'u8[8192]{0}', space=vmem, size = 0x2000, scoped, tag = 'output window, operand 0, single buffered']
    #allocation3 [shape = 's32[1]{0}', space=sflag, size = 0x4, scoped, tag = 'scoped memory for tpu_custom_call.1']
    %8 = vsyncpa [#allocation3], 0
    // Predicated region
    $region2: #{tpu_custom_call.1} parent=1 // pred_check
      _
    $region3: #{tpu_custom_call.1} parent=1 // pred_check_branch
      %10 = sbr.rel (0) target = $region5
    $region4: #{tpu_custom_call.1} parent=1 // pred_region
      _
    $region5: #{tpu_custom_call.1} parent=1 // pred_fallthru
      _
    // Predicated region
    $region6: #{tpu_custom_call.1} parent=1 // pred_check
      _
    $region7: #{tpu_custom_call.1} parent=1 // pred_check_branch
      %12 = sbr.rel (0) target = $region9
    $region8: #{tpu_custom_call.1} parent=1 // pred_region
      _
    $region9: #{tpu_custom_call.1} parent=1 // pred_fallthru
      _
    // Predicated region
    $region10: #{tpu_custom_call.1} parent=1 // pred_check
      _
    $region11: #{tpu_custom_call.1} parent=1 // pred_check_branch
      %14 = sbr.rel (0) target = $region13
    $region12: #{tpu_custom_call.1} parent=1 // pred_region
      _
    $region13: #{tpu_custom_call.1} parent=1 // pred_fallthru
      _
    %v15 = vld [vmem:[%s0] sm:$0xff]
    %v16 = vld [vmem:[%s0 + $0x8] sm:$0xff]
    %v19 = vcombine.high %v15, %v15
    %v20 = vcombine.high %v16, %v16
    %vm23 = vcmask 1043456
    %v24 = vsel %vm23, %v15, 0.0
    %v25 = vsel %vm23, %v16, 0.0
    %v26 = vadd.f32 %v24, %v25
    %v27 = vsel %vm23, %v19, 0.0
    %v28 = vsel %vm23, %v20, 0.0
    %v29 = vadd.f32 %v27, %v28
    %v30 = vsel %vm23, %v26, 0.0
    %v31 = vsel %vm23, %v29, 0.0
    %v32 = vadd.f32 %v30, %v31
    %33 = vadd.xlane.f32.xlu0 %v32
    %v34 = vpop.xlane.xlu0 %33
    %v35 = vrcp.pop 512.0
    %v36 = vmul.f32 %v34, %v35
    %v39 = vunpack.c.l.s4 839922192
    %v40 = vunpack.c.0.s8 %v39
    %v41 = vlaneseq
    %v42 = vshrl.u32 %v41, 7
    %v43 = vsub.s32 %v40, %v42
    %v44 = vrot.slane %v36, %v43
    %v46 = vsub.f32 %v15, %v44
    %v47 = vsub.f32 %v16, %v44
    %v48 = vmul.f32 %v46, %v46
    %v49 = vmul.f32 %v47, %v47
    %v52 = vcombine.high %v48, %v48
    %v53 = vcombine.high %v49, %v49
    %v56 = vsel %vm23, %v48, 0.0
    %v57 = vsel %vm23, %v49, 0.0
    %v58 = vadd.f32 %v56, %v57
    %v59 = vsel %vm23, %v52, 0.0
    %v60 = vsel %vm23, %v53, 0.0
    %v61 = vadd.f32 %v59, %v60
    %v62 = vsel %vm23, %v58, 0.0
    %v63 = vsel %vm23, %v61, 0.0
    %v64 = vadd.f32 %v62, %v63
    %65 = vadd.xlane.f32.xlu0 %v64
    %v66 = vpop.xlane.xlu0 %65
    %v67 = vmul.f32 %v66, %v35
    %v68 = vadd.f32 %v67, 1e-05
    %v69 = vrsqrt.pop %v68
    %s70 = smul.u32 0, 4
    %s71 = scalar_lea.vmem %s1, %s70
    %v72 = vld [vmem:[%s71] sm:$0xf]
    %v73 = vld [vmem:[%s71 + $0x4] sm:$0xf]
    %s74 = scalar_lea.vmem %s2, %s70
    %v75 = vld [vmem:[%s74] sm:$0xf]
    %v76 = vld [vmem:[%s74 + $0x4] sm:$0xf]
    %v77 = vmul.f32 %v72, %v69
    %v78 = vmul.f32 %v73, %v69
    %80 = vset.pattern.permute.xlu0 0
    %81 = vperm.xlu0 %80, %v77
    %v82 = vpop.permute.xlu0 %81
    %84 = vset.pattern.permute.xlu0 0
    %85 = vperm.xlu0 %84, %v78
    %v86 = vpop.permute.xlu0 %85
    %v88 = vunpack.c.l.s4 839922192
    %v89 = vunpack.c.0.s8 %v88
    %v90 = vlaneseq
    %v91 = vshrl.u32 %v90, 7
    %v92 = vsub.s32 %v89, %v91
    %v93 = vrot.slane %v82, %v92
    %v95 = vunpack.c.l.s4 839922192
    %v96 = vunpack.c.0.s8 %v95
    %v97 = vlaneseq
    %v98 = vshrl.u32 %v97, 7
    %v99 = vsub.s32 %v96, %v98
    %v100 = vrot.slane %v86, %v99
    %v103 = vmul.f32 %v46, %v93
    %v104 = vmul.f32 %v47, %v100
    %106 = vset.pattern.permute.xlu0 0
    %107 = vperm.xlu0 %106, %v75
    %v108 = vpop.permute.xlu0 %107
    %110 = vset.pattern.permute.xlu0 0
    %111 = vperm.xlu0 %110, %v76
    %v112 = vpop.permute.xlu0 %111
    %v114 = vunpack.c.l.s4 839922192
    %v115 = vunpack.c.0.s8 %v114
    %v116 = vlaneseq
    %v117 = vshrl.u32 %v116, 7
    %v118 = vsub.s32 %v115, %v117
    %v119 = vrot.slane %v108, %v118
    %v121 = vunpack.c.l.s4 839922192
    %v122 = vunpack.c.0.s8 %v121
    %v123 = vlaneseq
    %v124 = vshrl.u32 %v123, 7
    %v125 = vsub.s32 %v122, %v124
    %v126 = vrot.slane %v112, %v125
    %v129 = vadd.f32 %v103, %v119
    %v130 = vadd.f32 %v104, %v126
    %131 = vst [vmem:[#allocation2] sm:$0xff] %v129
    %132 = vst [vmem:[#allocation2 + $0x8] sm:$0xff] %v130
    // Predicated region
    $region14: #{tpu_custom_call.1} parent=1 // pred_check
      _
    $region15: #{tpu_custom_call.1} parent=1 // pred_check_branch
      %134 = sbr.rel (0) target = $region17
    $region16: #{tpu_custom_call.1} parent=1 // pred_region
      %s136 = ssub.s32 256, 256
      %137 = vsyncadd [#allocation3], %s136
      %s138 = sshll.u32 [#allocation2], 4
      %s139 = int_to_ptr.vmem [resolvable:$true] %s138
      %144 = dma.vmem_to_hbm [thread:$0]  %s139, 256, %s3, [#allocation3], 128, 128, 8
    $region17: #{tpu_custom_call.1} parent=1 // pred_fallthru
      _
    // Predicated region
    $region18: #{tpu_custom_call.1} parent=1 // pred_check
      _
    $region19: #{tpu_custom_call.1} parent=1 // pred_check_branch
      %146 = sbr.rel (0) target = $region21
    $region20: #{tpu_custom_call.1} parent=1 // pred_region
      %147 = dma.done [#allocation3], 256
    $region21: #{tpu_custom_call.1} parent=1 // pred_fallthru
      _
    %148 = vsyncpa [#allocation3], 1

</llo_original>
